<compile_context>
chip_gen: v7x
topology: tpu7x:2x2x1
jax: 0.10.0
libtpu: 0.0.40
codegen_flags: <defaults>
</compile_context>

<pallas_src>
import functools

import jax
import jax.numpy as jnp
import numpy as np
from jax import lax
from jax.experimental import pallas as pl
from jax.experimental.pallas import tpu as pltpu

LANES = 128
SUBLANES = 8
CHAINS = 4  # independent VALU accumulation chains per block


def _round_up(a: int, b: int) -> int:
    return ((a + b - 1) // b) * b


def _chip_kind() -> str:
    try:
        return jax.devices()[0].device_kind.lower()
    except Exception:
        return ""


def _max_block_rows(kind: str) -> int:
    # ~4 MiB / input / pipeline buffer on v6e/v7x (32 MiB scoped VMEM default),
    # ~2 MiB on v5e & older/unknown (16 MiB scoped default). 2 inputs x 2 bufs.
    if ("v6" in kind) or ("v7" in kind):
        return 8192
    return 4096


def _num_tensorcores(kind: str) -> int:
    # Chips where a leading "parallel" grid axis shards across TensorCores.
    if ("v4" in kind) or ("v5p" in kind) or ("v7" in kind):
        return 2
    return 1


def _focal_partial_kernel(x_ref, t_ref, o_ref, *, gamma, rows, block_rows,
                          tiles_per_split, total_blocks, hard_targets,
                          acc_rows, ragged_last_block):
    c = pl.program_id(0)          # TensorCore split (parallel)
    i = pl.program_id(1)          # streaming block within the split (arbitrary)
    blk = c * tiles_per_split + i

    # o_ref is this split's resident (1, acc_rows, 128) partial-sum block.
    @pl.when(i == 0)
    def _init():
        o_ref[...] = jnp.zeros_like(o_ref)

    x = x_ref[...].astype(jnp.float32)
    t = t_ref[...].astype(jnp.float32)

    # Numerically-stable BCE-with-logits (matches PyTorch):
    #   bce = max(x, 0) - x*t + log1p(exp(-|x|))
    e = jnp.exp(-jnp.abs(x))
    bce = jnp.maximum(x, 0.0) - x * t + jnp.log1p(e)

    if hard_targets:
        # For t in {0,1}: exp(-bce) == sigmoid(x) if t==1 else 1 - sigmoid(x).
        # Replaces one exp/element with a select + approx reciprocal (EUP vrcp).
        diff_side = jnp.logical_xor(x >= 0.0, t >= 0.5)
        pt = jnp.where(diff_side, e, 1.0) * pl.reciprocal(1.0 + e, approx=True)
    else:
        # Soft-label-exact fallback.
        pt = jnp.exp(-bce)

    one_minus_pt = 1.0 - pt

    # (1 - pt) ** gamma: small integer gamma lowered to VPU multiplies; the
    # pow (= exp + log on the EUP) is reserved for non-integer gamma.
    g_int = int(gamma)
    if float(g_int) == float(gamma) and 0 <= g_int <= 8:
        if g_int == 0:
            w = jnp.ones_like(one_minus_pt)
        else:
            w = one_minus_pt
            for _ in range(g_int - 1):
                w = w * one_minus_pt
    else:
        w = one_minus_pt ** jnp.float32(gamma)

    focal = w * bce  # alpha folded into the wrapper's final scale

    def _accumulate(vals):
        if acc_rows == SUBLANES and block_rows % (CHAINS * SUBLANES) == 0:
            # 4 independent accumulation chains (4 vregs), folded once per block.
            p = jnp.sum(vals.reshape(-1, CHAINS * SUBLANES, LANES), axis=0)
            p = jnp.sum(p.reshape(CHAINS, SUBLANES, LANES), axis=0)
        elif acc_rows == SUBLANES:
            p = jnp.sum(vals.reshape(-1, SUBLANES, LANES), axis=0)
        else:  # tiny inputs (rows < 8): accumulator is a single (1, 128) row
            p = jnp.sum(vals, axis=0, keepdims=True)
        o_ref[...] += p[None]

    if ragged_last_block:
        is_ragged = blk == (total_blocks - 1)

        @pl.when(jnp.logical_not(is_ragged))
        def _full():
            _accumulate(focal)

        @pl.when(is_ragged)
        def _masked():
            # Only the last block pays for the iota + compare + select; the
            # out-of-bounds rows (unspecified contents) are forced to zero.
            row_ids = lax.broadcasted_iota(jnp.int32, focal.shape, 0)
            valid = (blk * block_rows + row_ids) < rows
            _accumulate(jnp.where(valid, focal, 0.0))
    else:
        _accumulate(focal)


def focal_loss(inputs, targets, alpha=0.25, gamma=2.0):
    """Pallas TPU implementation of FocalLoss.forward (returns a scalar)."""
    x = jnp.reshape(inputs, (-1,))
    t = jnp.reshape(targets, (-1,))
    if t.dtype == jnp.bool_:
        t = t.astype(jnp.int8)  # avoid streaming 1-bit predicates through VMEM
    hard_targets = bool(jnp.issubdtype(t.dtype, jnp.integer))

    n = x.shape[0]
    n_main = (n // LANES) * LANES      # 128-aligned bulk handled by the kernel
    rows = n_main // LANES
    rem = n - n_main                   # < 128 ragged tail handled in plain JAX

    total = jnp.float32(0.0)

    if rows > 0:
        xb = x if rem == 0 else x[:n_main]
        tb = t if rem == 0 else t[:n_main]
        x2 = xb.reshape(rows, LANES)   # layout-preserving, no pad
        t2 = tb.reshape(rows, LANES)

        kind = _chip_kind()
        max_rows = _max_block_rows(kind)
        num_tc = _num_tensorcores(kind)

        # Pick block_rows (multiple of 16 for bf16 packing) and the block count.
        total_blocks = _round_up(pl.cdiv(rows, max_rows), num_tc)
        block_rows = _round_up(pl.cdiv(rows, total_blocks), 16)
        if block_rows > rows:  # small inputs: keep the block inside the array
            block_rows = rows if rows < SUBLANES else (rows // SUBLANES) * SUBLANES
        total_blocks = pl.cdiv(rows, block_rows)

        # Leading "parallel" split only when it divides cleanly (and only pays
        # off on dual-TensorCore chips anyway).
        num_splits = num_tc if total_blocks % num_tc == 0 else 1
        tiles_per_split = total_blocks // num_splits

        acc_rows = SUBLANES if block_rows % SUBLANES == 0 else 1
        ragged = (rows % block_rows) != 0

        kernel = functools.partial(
            _focal_partial_kernel,
            gamma=float(gamma),
            rows=rows,
            block_rows=block_rows,
            tiles_per_split=tiles_per_split,
            total_blocks=total_blocks,
            hard_targets=hard_targets,
            acc_rows=acc_rows,
            ragged_last_block=ragged,
        )

        def in_map(c, i):
            return (c * tiles_per_split + i, 0)

        partials = pl.pallas_call(
            kernel,
            out_shape=jax.ShapeDtypeStruct((num_splits, acc_rows, LANES),
                                           jnp.float32),
            grid_spec=pltpu.PrefetchScalarGridSpec(
                num_scalar_prefetch=0,
                grid=(num_splits, tiles_per_split),
                in_specs=[
                    pl.BlockSpec((block_rows, LANES), in_map),
                    pl.BlockSpec((block_rows, LANES), in_map),
                ],
                out_specs=pl.BlockSpec((1, acc_rows, LANES),
                                       lambda c, i: (c, 0, 0)),
            ),
            compiler_params=pltpu.CompilerParams(
                dimension_semantics=("parallel", "arbitrary"),
            ),
        )(x2, t2)

        total = total + jnp.sum(partials, dtype=jnp.float32)

    if rem > 0:
        # Tiny (< 128 element) tail: exact plain-JAX path, no extra HBM pass
        # over the bulk and no sentinel-padding tricks.
        xr = x[n_main:].astype(jnp.float32)
        tr = t[n_main:].astype(jnp.float32)
        bce_r = jnp.maximum(xr, 0.0) - xr * tr + jnp.log1p(jnp.exp(-jnp.abs(xr)))
        pt_r = jnp.exp(-bce_r)
        total = total + jnp.sum((1.0 - pt_r) ** jnp.float32(gamma) * bce_r)

    return total * jnp.float32(alpha) / jnp.float32(n)


def _focal_loss_ref(inputs, targets, alpha=0.25, gamma=2.0):
    x = jnp.reshape(inputs, (-1,)).astype(jnp.float32)
    t = jnp.reshape(targets, (-1,)).astype(jnp.float32)
    bce = jnp.maximum(x, 0.0) - x * t + jnp.log1p(jnp.exp(-jnp.abs(x)))
    pt = jnp.exp(-bce)
    return jnp.mean(alpha * (1.0 - pt) ** gamma * bce)


if __name__ == "__main__":
    key = jax.random.PRNGKey(0)
    k1, k2, k3, k4, k5, k6 = jax.random.split(key, 6)

    # 1) NCHW logits with {0,1} float targets (soft-label-exact path).
    x1 = jax.random.normal(k1, (2, 4, 16, 16), dtype=jnp.float32)
    t1 = (jax.random.uniform(k2, (2, 4, 16, 16)) > 0.5).astype(jnp.float32)
    out1 = jax.block_until_ready(focal_loss(x1, t1, alpha=0.25, gamma=2.0))
    ref1 = jax.block_until_ready(_focal_loss_ref(x1, t1, 0.25, 2.0))
    np.testing.assert_allclose(np.asarray(out1), np.asarray(ref1),
                               rtol=1e-5, atol=1e-6)

    # 2) Ragged size (n = 1155): exercises in-kernel row masking on the last
    #    block plus the plain-JAX <128-element remainder (no full-array pad).
    x2 = jax.random.normal(k3, (3, 5, 7, 11), dtype=jnp.float32)
    t2 = (jax.random.uniform(k4, (3, 5, 7, 11)) > 0.5).astype(jnp.float32)
    out2 = jax.block_until_ready(focal_loss(x2, t2, 0.25, 2.0))
    ref2 = jax.block_until_ready(_focal_loss_ref(x2, t2, 0.25, 2.0))
    np.testing.assert_allclose(np.asarray(out2), np.asarray(ref2),
                               rtol=1e-5, atol=1e-6)

    # 3) Hard integer {0,1} targets: exercises the reduced-EUP path
    #    (select + approx reciprocal), hence a slightly looser tolerance.
    x3 = jax.random.normal(k5, (4, 8, 32), dtype=jnp.float32)
    t3 = (jax.random.uniform(k6, (4, 8, 32)) > 0.5).astype(jnp.int32)
    out3 = jax.block_until_ready(focal_loss(x3, t3, 0.25, 2.0))
    ref3 = jax.block_until_ready(_focal_loss_ref(x3, t3, 0.25, 2.0))
    np.testing.assert_allclose(np.asarray(out3), np.asarray(ref3),
                               rtol=5e-3, atol=1e-5)

    print("KERNEL_OK")
</pallas_src>

<mosaic_0001>
module attributes {stable_mosaic.version = 11 : i64} {
  func.func @_focal_partial_kernel(%arg0: i32, %arg1: i32, %arg2: memref<16x128xf32, #tpu.memory_space<vmem>>, %arg3: memref<16x128xf32, #tpu.memory_space<vmem>>, %arg4: memref<1x8x128xf32, #tpu.memory_space<vmem>>) attributes {dimension_semantics = [#tpu.dimension_semantics<parallel>, #tpu.dimension_semantics<arbitrary>], iteration_bounds = array<i64: 1, 1>, scalar_prefetch = 0 : i64, scratch_operands = 0 : i64, tpu.core_type = #tpu.core_type<tc>, window_params = [{transform_indices = @transform_0, window_bounds = array<i64: 16, 128>}, {transform_indices = @transform_1, window_bounds = array<i64: 16, 128>}, {transform_indices = @transform_2, window_bounds = array<i64: 1, 8, 128>}]} {
    %c0_i32 = arith.constant 0 : i32
    %0 = arith.cmpi eq, %arg1, %c0_i32 : i32
    %1 = arith.extui %0 : i1 to i32
    %c0_i32_0 = arith.constant 0 : i32
    %2 = arith.cmpi ne, %1, %c0_i32_0 : i32
    scf.if %2 {
      %cst_14 = arith.constant 0.000000e+00 : f32
      %28 = vector.broadcast %cst_14 : f32 to vector<1x8x128xf32>
      %c0_15 = arith.constant 0 : index
      %c0_16 = arith.constant 0 : index
      %c0_17 = arith.constant 0 : index
      %29 = vector.load %arg4[%c0_15, %c0_16, %c0_17] : memref<1x8x128xf32, #tpu.memory_space<vmem>>, vector<1x8x128xf32>
      tpu.vector_store %arg4[%c0_15, %c0_16, %c0_17], %28 {strides = array<i32>} : memref<1x8x128xf32, #tpu.memory_space<vmem>>, vector<1x8x128xf32>,
    } else {
    }
    %c0 = arith.constant 0 : index
    %c0_1 = arith.constant 0 : index
    %3 = vector.load %arg2[%c0, %c0_1] : memref<16x128xf32, #tpu.memory_space<vmem>>, vector<16x128xf32>
    %c0_2 = arith.constant 0 : index
    %c0_3 = arith.constant 0 : index
    %4 = vector.load %arg3[%c0_2, %c0_3] : memref<16x128xf32, #tpu.memory_space<vmem>>, vector<16x128xf32>
    %5 = math.absf %3 : vector<16x128xf32>
    %cst = arith.constant 0.000000e+00 : f32
    %6 = vector.broadcast %cst : f32 to vector<16x128xf32>
    %7 = arith.subf %6, %5 : vector<16x128xf32>
    %8 = math.exp %7 : vector<16x128xf32>
    %cst_4 = arith.constant 0.000000e+00 : f32
    %9 = vector.broadcast %cst_4 : f32 to vector<16x128xf32>
    %10 = arith.maximumf %3, %9 : vector<16x128xf32>
    %11 = arith.mulf %3, %4 : vector<16x128xf32>
    %12 = arith.subf %10, %11 : vector<16x128xf32>
    %13 = math.log1p %8 : vector<16x128xf32>
    %14 = arith.addf %12, %13 : vector<16x128xf32>
    %cst_5 = arith.constant 0.000000e+00 : f32
    %15 = vector.broadcast %cst_5 : f32 to vector<16x128xf32>
    %16 = arith.subf %15, %14 : vector<16x128xf32>
    %17 = math.exp %16 : vector<16x128xf32>
    %cst_6 = arith.constant 1.000000e+00 : f32
    %18 = vector.broadcast %cst_6 : f32 to vector<16x128xf32>
    %19 = arith.subf %18, %17 : vector<16x128xf32>
    %20 = arith.mulf %19, %19 : vector<16x128xf32>
    %21 = arith.mulf %20, %14 : vector<16x128xf32>
    %22 = vector.shape_cast %21 : vector<16x128xf32> to vector<2x8x128xf32>
    %cst_7 = arith.constant dense<0.000000e+00> : vector<8x128xf32>
    %23 = vector.multi_reduction <add>, %22, %cst_7 [0] : vector<2x8x128xf32> to vector<8x128xf32>
    %c0_8 = arith.constant 0 : index
    %c0_9 = arith.constant 0 : index
    %c0_10 = arith.constant 0 : index
    %24 = vector.load %arg4[%c0_8, %c0_9, %c0_10] : memref<1x8x128xf32, #tpu.memory_space<vmem>>, vector<1x8x128xf32>
    %25 = vector.shape_cast %23 : vector<8x128xf32> to vector<1x8x128xf32>
    %26 = arith.addf %24, %25 : vector<1x8x128xf32>
    %c0_11 = arith.constant 0 : index
    %c0_12 = arith.constant 0 : index
    %c0_13 = arith.constant 0 : index
    %27 = vector.load %arg4[%c0_11, %c0_12, %c0_13] : memref<1x8x128xf32, #tpu.memory_space<vmem>>, vector<1x8x128xf32>
    tpu.vector_store %arg4[%c0_11, %c0_12, %c0_13], %26 {strides = array<i32>} : memref<1x8x128xf32, #tpu.memory_space<vmem>>, vector<1x8x128xf32>,
    return
  }
  func.func @transform_0(%arg0: i32, %arg1: i32) -> (i32, i32) {
    %c1_i32 = arith.constant 1 : i32
    %0 = arith.muli %arg0, %c1_i32 : i32
    %1 = arith.addi %0, %arg1 : i32
    %c0_i32 = arith.constant 0 : i32
    %c0_i32_0 = arith.constant 0 : i32
    return %1, %c0_i32 : i32, i32
  }
  func.func @transform_1(%arg0: i32, %arg1: i32) -> (i32, i32) {
    %c1_i32 = arith.constant 1 : i32
    %0 = arith.muli %arg0, %c1_i32 : i32
    %1 = arith.addi %0, %arg1 : i32
    %c0_i32 = arith.constant 0 : i32
    %c0_i32_0 = arith.constant 0 : i32
    return %1, %c0_i32 : i32, i32
  }
  func.func @transform_2(%arg0: i32, %arg1: i32) -> (i32, i32, i32) {
    %c0_i32 = arith.constant 0 : i32
    %c0_i32_0 = arith.constant 0 : i32
    %c0_i32_1 = arith.constant 0 : i32
    return %arg0, %c0_i32, %c0_i32_0 : i32, i32, i32
  }
}

</mosaic_0001>

<llo_original>
// kernel: tpu_custom_call.1
$region0: #{tpu_custom_call.1}
  #allocation0 [shape = 'u32[]', space=smem, size = 0x4, offset = 0x4, fixed_abs, tag = 'smem constant byte address 0x4 - core index']
  #allocation1 [shape = 'u32[144,128]{1,0:T(1,128)}', space=vmem, size = 0x12000, scoped, tag = 'internal scratch']
  %s0 = inlined_call_operand.hbm [shape: f32[16,128], index: 0, kind: input, shape index: {}]
  %s1 = inlined_call_operand.hbm [shape: f32[16,128], index: 1, kind: input, shape index: {}]
  %s2 = inlined_call_operand.hbm [shape: f32[1,8,128], index: 2, kind: output, shape index: {}]
  %s3 = sld [smem:[#allocation0]]
  $region30: #{tpu_custom_call.1} parent=0
    _
  %s5 = ssub.s32 1, %s3
  %s6 = scalar_select 0, %s5, %s3
  $region1: #{tpu_custom_call.1} parent=0
    #allocation2 [shape = 'u8[8192]{0}', space=vmem, size = 0x2000, scoped, tag = 'input window, operand 0, single buffered']
    #allocation3 [shape = 's32[1]{0}', space=sflag, size = 0x4, scoped, tag = 'scoped memory for tpu_custom_call.1']
    #allocation4 [shape = 's32[1]{0}', space=sflag, size = 0x4, scoped, tag = 'scoped memory for tpu_custom_call.1']
    #allocation5 [shape = 'u8[8192]{0}', space=vmem, size = 0x2000, scoped, tag = 'input window, operand 1, single buffered']
    #allocation6 [shape = 's32[1]{0}', space=sflag, size = 0x4, scoped, tag = 'scoped memory for tpu_custom_call.1']
    #allocation7 [shape = 'u8[4096]{0}', space=vmem, size = 0x1000, scoped, tag = 'output window, operand 0, single buffered']
    %7 = vsyncpa [#allocation3], 0
    %8 = vsyncpa [#allocation6], 0
    %9 = vsyncpa [#allocation4], 0
    // Predicated region
    $region2: #{tpu_custom_call.1} parent=1 // pred_check
      _
    $region3: #{tpu_custom_call.1} parent=1 // pred_check_branch
      %11 = sbr.rel (0) target = $region5
    $region4: #{tpu_custom_call.1} parent=1 // pred_region
      %s12 = sadd.s32 0, 0
      %s13 = smul.u32 2, %s12
      %s15 = ssub.s32 256, 256
      %16 = vsyncadd [#allocation3], %s15
      %s17 = smul.addr %s13, 128
      %s18 = scalar_lea.hbm %s0, %s17
      %s19 = sshll.u32 [#allocation2], 4
      %s20 = int_to_ptr.vmem [resolvable:$true] %s19
      %25 = dma.hbm_to_vmem [thread:$0]  %s18, 256, %s20, [#allocation3], 128, 128, 8
    $region5: #{tpu_custom_call.1} parent=1 // pred_fallthru
      _
    // Predicated region
    $region6: #{tpu_custom_call.1} parent=1 // pred_check
      _
    $region7: #{tpu_custom_call.1} parent=1 // pred_check_branch
      %27 = sbr.rel (0) target = $region9
    $region8: #{tpu_custom_call.1} parent=1 // pred_region
      %s28 = sadd.s32 0, 0
      %s29 = smul.u32 2, %s28
      %s31 = ssub.s32 256, 256
      %32 = vsyncadd [#allocation6], %s31
      %s33 = smul.addr %s29, 128
      %s34 = scalar_lea.hbm %s1, %s33
      %s35 = sshll.u32 [#allocation5], 4
      %s36 = int_to_ptr.vmem [resolvable:$true] %s35
      %41 = dma.hbm_to_vmem [thread:$0]  %s34, 256, %s36, [#allocation6], 128, 128, 8
    $region9: #{tpu_custom_call.1} parent=1 // pred_fallthru
      _
    // Predicated region
    $region10: #{tpu_custom_call.1} parent=1 // pred_check
      _
    $region11: #{tpu_custom_call.1} parent=1 // pred_check_branch
      %43 = sbr.rel (0) target = $region13
    $region12: #{tpu_custom_call.1} parent=1 // pred_region
      %44 = dma.done [#allocation3], 256
    $region13: #{tpu_custom_call.1} parent=1 // pred_fallthru
      _
    // Predicated region
    $region14: #{tpu_custom_call.1} parent=1 // pred_check
      _
    $region15: #{tpu_custom_call.1} parent=1 // pred_check_branch
      %46 = sbr.rel (0) target = $region17
    $region16: #{tpu_custom_call.1} parent=1 // pred_region
      %47 = dma.done [#allocation6], 256
    $region17: #{tpu_custom_call.1} parent=1 // pred_fallthru
      _
    %s48 = sadd.s32 0, 0
    %s49 = smul.u32 2, %s48
    %s50 = sadd.s32 0, 0
    %s51 = smul.u32 2, %s50
    %p52 = scmp.eq.s32.totalorder 0, 0
    // Predicated region
    $region18: #{tpu_custom_call.1} parent=1 // pred_check
      %p53 = pneg %p52
    $region19: #{tpu_custom_call.1} parent=1 // pred_check_branch
      %55 = sbr.rel (%p53) target = $region21
    $region20: #{tpu_custom_call.1} parent=1 // pred_region
      %56 = vst [vmem:[#allocation7] sm:$0xff] 0.0
    $region21: #{tpu_custom_call.1} parent=1 // pred_fallthru
      _
    %v57 = vld [vmem:[#allocation2] sm:$0xff]
    %v58 = vld [vmem:[#allocation2 + $0x8] sm:$0xff]
    %v59 = vld [vmem:[#allocation5] sm:$0xff]
    %v60 = vld [vmem:[#allocation5 + $0x8] sm:$0xff]
    %v61 = vand.u32 2147483647, %v57
    %v62 = vand.u32 2147483647, %v58
    %v63 = vsub.f32 0.0, %v61
    %v64 = vsub.f32 0.0, %v62
    %v65 = vmul.f32 %v63, 1.442695
    %v66 = vpow.pop %v65
    %v67 = vmul.f32 %v64, 1.442695
    %v68 = vpow.pop %v67
    %v69 = vmax.f32 %v57, 0.0
    %v70 = vmax.f32 %v58, 0.0
    %v71 = vmul.f32 %v57, %v59
    %v72 = vmul.f32 %v58, %v60
    %v73 = vsub.f32 %v69, %v71
    %v74 = vsub.f32 %v70, %v72
    %v75 = vadd.f32 %v66, 1.0
    %v76 = vlog2.pop %v75
    %v77 = vmul.f32 %v76, 0.6931472
    %v78 = vmul.f32 -0.5, %v66
    %v79 = vadd.f32 %v78, 1.0
    %v80 = vmul.f32 %v79, %v66
    %v81 = vand.u32 2147483647, %v66
    %vm82 = vcmp.lt.f32.partialorder %v81, 0.0004427343
    %v83 = vsel %vm82, %v80, %v77
    %v84 = vadd.f32 %v68, 1.0
    %v85 = vlog2.pop %v84
    %v86 = vmul.f32 %v85, 0.6931472
    %v87 = vmul.f32 -0.5, %v68
    %v88 = vadd.f32 %v87, 1.0
    %v89 = vmul.f32 %v88, %v68
    %v90 = vand.u32 2147483647, %v68
    %vm91 = vcmp.lt.f32.partialorder %v90, 0.0004427343
    %v92 = vsel %vm91, %v89, %v86
    %v93 = vadd.f32 %v73, %v83
    %v94 = vadd.f32 %v74, %v92
    %v95 = vsub.f32 0.0, %v93
    %v96 = vsub.f32 0.0, %v94
    %v97 = vmul.f32 %v95, 1.442695
    %v98 = vpow.pop %v97
    %v99 = vmul.f32 %v96, 1.442695
    %v100 = vpow.pop %v99
    %v101 = vsub.f32 1.0, %v98
    %v102 = vsub.f32 1.0, %v100
    %v103 = vmul.f32 %v101, %v101
    %v104 = vmul.f32 %v102, %v102
    %v105 = vmul.f32 %v103, %v93
    %v106 = vmul.f32 %v104, %v94
    %v107 = vadd.f32 %v105, %v106
    %v108 = vld [vmem:[#allocation7] sm:$0xff]
    %v109 = vadd.f32 %v108, %v107
    %110 = vst [vmem:[#allocation7] sm:$0xff] %v109
    // Predicated region
    $region22: #{tpu_custom_call.1} parent=1 // pred_check
      _
    $region23: #{tpu_custom_call.1} parent=1 // pred_check_branch
      %112 = sbr.rel (0) target = $region25
    $region24: #{tpu_custom_call.1} parent=1 // pred_region
      %s114 = ssub.s32 128, 128
      %115 = vsyncadd [#allocation4], %s114
      %s117 = sshll.u32 [#allocation7], 4
      %s118 = int_to_ptr.vmem [resolvable:$true] %s117
      %120 = dma.vmem_to_hbm [thread:$0]  %s118, 128, %s2, [#allocation4]
    $region25: #{tpu_custom_call.1} parent=1 // pred_fallthru
      _
    // Predicated region
    $region26: #{tpu_custom_call.1} parent=1 // pred_check
      _
    $region27: #{tpu_custom_call.1} parent=1 // pred_check_branch
      %122 = sbr.rel (0) target = $region29
    $region28: #{tpu_custom_call.1} parent=1 // pred_region
      %123 = dma.done [#allocation4], 128
    $region29: #{tpu_custom_call.1} parent=1 // pred_fallthru
      _
    %124 = vsyncpa [#allocation3], 1
    %125 = vsyncpa [#allocation6], 1
    %126 = vsyncpa [#allocation4], 1

</llo_original>
